<compile_context>
chip_gen: v6e
topology: v6e:2x2x1
jax: 0.10.0
libtpu: 0.0.40
codegen_flags: <defaults>
</compile_context>

<pallas_src>
import jax
import jax.numpy as jnp
from jax import lax
from jax.experimental import pallas as pl
from jax.experimental.pallas import tpu as pltpu


def _round_up(x, m):
    return (x + m - 1) // m * m


def _gather_rows_kernel(idx_ref, table_ref, out_ref, sem):
    """Gather `rows` embedding rows from an HBM table directly into the output block.

    idx_ref   : SMEM (n_pad,) int32   -- global row ids (scalar prefetch)
    table_ref : HBM  (V_total, D)     -- concatenated embedding tables (pl.ANY)
    out_ref   : VMEM (rows, D)        -- output block for this grid step (DMA target)
    sem       : scalar DMA semaphore shared by all row copies of this step
    """
    rows = out_ref.shape[0]
    base = pl.program_id(0) * rows

    def issue(n, carry):
        row_id = idx_ref[base + n]
        pltpu.make_async_copy(
            table_ref.at[pl.ds(row_id, 1), :],   # (1, D) row in HBM
            out_ref.at[pl.ds(n, 1), :],          # (1, D) slot of the output block
            sem,
        ).start()
        return carry

    # Unrolled issue loop: descriptor builds + SMEM index loads co-issue.
    lax.fori_loop(0, rows, issue, 0, unroll=min(rows, 8))

    # Single aggregate wait: byte counts on the shared DMA semaphore sum across all
    # `rows` copies, so one descriptor covering the full (rows, D) destination drains
    # them all.  (src/dst shapes only parameterize the wait size; nothing is copied.)
    pltpu.make_async_copy(out_ref, out_ref, sem).wait()


def gather_rows_pallas(table, flat_idx, rows_per_step=None, max_rows_per_call=32768):
    """table: (V_total, D); flat_idx: (N,) int32  ->  (N, D) == table[flat_idx]."""
    flat_idx = jnp.asarray(flat_idx, jnp.int32).reshape(-1)
    n = int(flat_idx.shape[0])
    _, d = table.shape

    # Keep SMEM use bounded for huge index vectors by splitting across calls.
    if n > max_rows_per_call:
        parts = [
            gather_rows_pallas(table, flat_idx[i:i + max_rows_per_call],
                               rows_per_step, max_rows_per_call)
            for i in range(0, n, max_rows_per_call)
        ]
        return jnp.concatenate(parts, axis=0)

    if rows_per_step is None:
        if n >= 1024:
            rows_per_step = 512            # amortizes ~0.35us/step; ~64 KiB block @ D=32
        else:
            # Small inputs: still aim for >= 2 grid steps (v7x dual-TC) when possible,
            # sublane-aligned (multiple of 8).
            rows_per_step = max(8, _round_up((n + 1) // 2, 8))
    assert rows_per_step % 8 == 0

    n_pad = _round_up(n, rows_per_step)
    idx_pad = jnp.pad(flat_idx, (0, n_pad - n))   # padding gathers row 0, discarded below

    out = pl.pallas_call(
        _gather_rows_kernel,
        out_shape=jax.ShapeDtypeStruct((n_pad, d), table.dtype),
        grid_spec=pltpu.PrefetchScalarGridSpec(
            num_scalar_prefetch=1,                         # indices -> SMEM
            grid=(n_pad // rows_per_step,),
            in_specs=[pl.BlockSpec(memory_space=pl.ANY)],  # table stays in HBM
            out_specs=pl.BlockSpec((rows_per_step, d), lambda s, idx: (s, 0)),
            scratch_shapes=[pltpu.SemaphoreType.DMA(())],
        ),
        compiler_params=pltpu.CompilerParams(dimension_semantics=("parallel",)),
    )(idx_pad, table)
    return out[:n]


class EmbeddingLayerPallas:
    """JAX/Pallas port of rec_pangu EmbeddingLayer (forward pass only).

    All feature tables live concatenated in one (V_total, D) array; every branch of
    forward() becomes a single flat row-gather kernel call producing (N, D) rows in
    output order, so the wrapper only does free leading-dim reshapes (no transpose).
    """

    def __init__(self, enc_dict, embedding_dim, key, table_dtype=jnp.float32):
        self.enc_dict = enc_dict
        self.embedding_dim = embedding_dim
        self.emb_feature = [c for c in enc_dict if 'vocab_size' in enc_dict[c]]

        keys = jax.random.split(key, len(self.emb_feature))
        self.tables = {}      # per-feature views (host-side reference/checking)
        self.offsets = {}     # row offset of each feature inside the big table
        self.num_rows = {}    # vocab_size + 1 per feature
        parts, off = [], 0
        for k, col in zip(keys, self.emb_feature):
            rows = enc_dict[col]['vocab_size'] + 1
            t = jax.random.normal(k, (rows, embedding_dim),
                                  dtype=jnp.float32).astype(table_dtype)
            self.tables[col] = t
            self.offsets[col] = off
            self.num_rows[col] = rows
            parts.append(t)
            off += rows
        self.table = jnp.concatenate(parts, axis=0)      # (V_total, D), lives in HBM

    # TODO(synk): set_weights / trainable flags are host-side parameter management in
    # the PyTorch module and have no kernel equivalent here.

    def _global_rows(self, col, idx):
        idx = jnp.asarray(idx, jnp.int32).reshape(-1)
        # Clamp (nn.Embedding would raise on OOB); keeps every row DMA in-bounds and
        # inside this feature's slice of the concatenated table.
        idx = jnp.clip(idx, 0, self.num_rows[col] - 1)
        return idx + self.offsets[col]

    def forward(self, X, name=None):
        d = self.embedding_dim
        if name is None:
            # PyTorch: per-feature (B,1,D) lookups, stack(dim=1).squeeze(2) -> (B,F,D)
            per_col = [self._global_rows(col, X[col]) for col in self.emb_feature]
            b = per_col[0].shape[0]
            flat = jnp.stack(per_col, axis=1).reshape(-1)        # (B*F,) row-major
            rows = gather_rows_pallas(self.table, flat)          # (B*F, D)
            return rows.reshape(b, len(self.emb_feature), d)     # free reshape
        if 'seq' in name:
            inp = jnp.asarray(X[name], jnp.int32)                # (B, L)
            # TODO(synk): wrapper-side dedup of repeated seq ids would further cut DMAs.
            flat = self._global_rows(name.replace('_seq', ''), inp)
            rows = gather_rows_pallas(self.table, flat)
            return rows.reshape(inp.shape + (d,))                # (B, L, D)
        inp = jnp.asarray(X[name], jnp.int32).reshape(-1)        # (B,)
        rows = gather_rows_pallas(self.table, self._global_rows(name, inp))
        return rows.reshape(inp.shape[0], 1, d)                  # (B, 1, D)


if __name__ == "__main__":
    enc_dict = {
        'user_id': {'vocab_size': 100},
        'item_id': {'vocab_size': 50},
        'cate_id': {'vocab_size': 20},
        'price':   {'min': 0.0, 'max': 1.0},   # dense feature -> no embedding
    }
    embedding_dim = 32
    batch = 4
    seq_len = 6

    layer = EmbeddingLayerPallas(enc_dict, embedding_dim, jax.random.PRNGKey(0))

    key = jax.random.PRNGKey(1)
    X = {}
    for col in layer.emb_feature:
        key, sub = jax.random.split(key)
        vocab = enc_dict[col]['vocab_size'] + 1
        X[col] = jax.random.randint(sub, (batch,), 0, vocab, dtype=jnp.int32)
    key, sub = jax.random.split(key)
    X['item_id_seq'] = jax.random.randint(
        sub, (batch, seq_len), 0, enc_dict['item_id']['vocab_size'] + 1, dtype=jnp.int32)

    # --- default branch: (B, F, D) == torch.stack(..., dim=1).squeeze(2) -------------
    out = jax.block_until_ready(layer.forward(X))
    ref = jnp.stack([jnp.take(layer.tables[col], X[col], axis=0)
                     for col in layer.emb_feature], axis=1)
    assert out.shape == (batch, len(layer.emb_feature), embedding_dim), out.shape
    assert out.dtype == jnp.float32
    assert jnp.allclose(out, ref, atol=1e-6), "default branch mismatch vs reference"

    # --- single-feature branch: (B, 1, D) --------------------------------------------
    out_one = jax.block_until_ready(layer.forward(X, name='item_id'))
    ref_one = jnp.take(layer.tables['item_id'], X['item_id'], axis=0)[:, None, :]
    assert out_one.shape == (batch, 1, embedding_dim)
    assert jnp.allclose(out_one, ref_one, atol=1e-6), "name branch mismatch"

    # --- sequence branch: (B, L, D) ---------------------------------------------------
    out_seq = jax.block_until_ready(layer.forward(X, name='item_id_seq'))
    ref_seq = jnp.take(layer.tables['item_id'], X['item_id_seq'].reshape(-1), axis=0
                       ).reshape(batch, seq_len, embedding_dim)
    assert out_seq.shape == (batch, seq_len, embedding_dim)
    assert jnp.allclose(out_seq, ref_seq, atol=1e-6), "seq branch mismatch"

    print("KERNEL_OK")
</pallas_src>

<mosaic_0001>
module attributes {stable_mosaic.version = 11 : i64} {
  func.func @_gather_rows_kernel(%arg0: i32, %arg1: memref<16xi32, #tpu.memory_space<smem>>, %arg2: memref<173x32xf32, #tpu.memory_space<any>>, %arg3: memref<8x32xf32, #tpu.memory_space<vmem>>, %arg4: memref<!tpu.dma_semaphore, #tpu.memory_space<semaphore_mem>>) attributes {dimension_semantics = [#tpu.dimension_semantics<parallel>], iteration_bounds = array<i64: 2>, scalar_prefetch = 1 : i64, scratch_operands = 1 : i64, tpu.core_type = #tpu.core_type<tc>, window_params = [{}, {transform_indices = @transform_1, window_bounds = array<i64: 8, 32>}]} {
    %c8_i32 = arith.constant 8 : i32
    %0 = arith.muli %arg0, %c8_i32 : i32
    %c0_i32 = arith.constant 0 : i32
    %1 = arith.addi %0, %c0_i32 : i32
    %2 = arith.index_cast %1 : i32 to index
    %3 = memref.load %arg1[%2] : memref<16xi32, #tpu.memory_space<smem>>
    %c0_i32_0 = arith.constant 0 : i32
    %4 = tpu.memref_slice %arg2[%3, %c0_i32_0] : memref<173x32xf32, #tpu.memory_space<any>> -> memref<1x32xf32, #tpu.memory_space<any>>
    %c0_i32_1 = arith.constant 0 : i32
    %5 = tpu.memref_slice %arg3[%c0_i32, %c0_i32_1] : memref<8x32xf32, #tpu.memory_space<vmem>> -> memref<1x32xf32, #tpu.memory_space<vmem>>
    tpu.enqueue_dma source(%4 : memref<1x32xf32, #tpu.memory_space<any>>) target(%5 : memref<1x32xf32, #tpu.memory_space<vmem>>) target_semaphore(%arg4 : memref<!tpu.dma_semaphore, #tpu.memory_space<semaphore_mem>>)
    %c1_i32 = arith.constant 1 : i32
    %6 = arith.addi %0, %c1_i32 : i32
    %7 = arith.index_cast %6 : i32 to index
    %8 = memref.load %arg1[%7] : memref<16xi32, #tpu.memory_space<smem>>
    %c0_i32_2 = arith.constant 0 : i32
    %9 = tpu.memref_slice %arg2[%8, %c0_i32_2] : memref<173x32xf32, #tpu.memory_space<any>> -> memref<1x32xf32, #tpu.memory_space<any>>
    %c0_i32_3 = arith.constant 0 : i32
    %10 = tpu.memref_slice %arg3[%c1_i32, %c0_i32_3] : memref<8x32xf32, #tpu.memory_space<vmem>> -> memref<1x32xf32, #tpu.memory_space<vmem>>
    tpu.enqueue_dma source(%9 : memref<1x32xf32, #tpu.memory_space<any>>) target(%10 : memref<1x32xf32, #tpu.memory_space<vmem>>) target_semaphore(%arg4 : memref<!tpu.dma_semaphore, #tpu.memory_space<semaphore_mem>>)
    %c2_i32 = arith.constant 2 : i32
    %11 = arith.addi %0, %c2_i32 : i32
    %12 = arith.index_cast %11 : i32 to index
    %13 = memref.load %arg1[%12] : memref<16xi32, #tpu.memory_space<smem>>
    %c0_i32_4 = arith.constant 0 : i32
    %14 = tpu.memref_slice %arg2[%13, %c0_i32_4] : memref<173x32xf32, #tpu.memory_space<any>> -> memref<1x32xf32, #tpu.memory_space<any>>
    %c0_i32_5 = arith.constant 0 : i32
    %15 = tpu.memref_slice %arg3[%c2_i32, %c0_i32_5] : memref<8x32xf32, #tpu.memory_space<vmem>> -> memref<1x32xf32, #tpu.memory_space<vmem>>
    tpu.enqueue_dma source(%14 : memref<1x32xf32, #tpu.memory_space<any>>) target(%15 : memref<1x32xf32, #tpu.memory_space<vmem>>) target_semaphore(%arg4 : memref<!tpu.dma_semaphore, #tpu.memory_space<semaphore_mem>>)
    %c3_i32 = arith.constant 3 : i32
    %16 = arith.addi %0, %c3_i32 : i32
    %17 = arith.index_cast %16 : i32 to index
    %18 = memref.load %arg1[%17] : memref<16xi32, #tpu.memory_space<smem>>
    %c0_i32_6 = arith.constant 0 : i32
    %19 = tpu.memref_slice %arg2[%18, %c0_i32_6] : memref<173x32xf32, #tpu.memory_space<any>> -> memref<1x32xf32, #tpu.memory_space<any>>
    %c0_i32_7 = arith.constant 0 : i32
    %20 = tpu.memref_slice %arg3[%c3_i32, %c0_i32_7] : memref<8x32xf32, #tpu.memory_space<vmem>> -> memref<1x32xf32, #tpu.memory_space<vmem>>
    tpu.enqueue_dma source(%19 : memref<1x32xf32, #tpu.memory_space<any>>) target(%20 : memref<1x32xf32, #tpu.memory_space<vmem>>) target_semaphore(%arg4 : memref<!tpu.dma_semaphore, #tpu.memory_space<semaphore_mem>>)
    %c4_i32 = arith.constant 4 : i32
    %21 = arith.addi %0, %c4_i32 : i32
    %22 = arith.index_cast %21 : i32 to index
    %23 = memref.load %arg1[%22] : memref<16xi32, #tpu.memory_space<smem>>
    %c0_i32_8 = arith.constant 0 : i32
    %24 = tpu.memref_slice %arg2[%23, %c0_i32_8] : memref<173x32xf32, #tpu.memory_space<any>> -> memref<1x32xf32, #tpu.memory_space<any>>
    %c0_i32_9 = arith.constant 0 : i32
    %25 = tpu.memref_slice %arg3[%c4_i32, %c0_i32_9] : memref<8x32xf32, #tpu.memory_space<vmem>> -> memref<1x32xf32, #tpu.memory_space<vmem>>
    tpu.enqueue_dma source(%24 : memref<1x32xf32, #tpu.memory_space<any>>) target(%25 : memref<1x32xf32, #tpu.memory_space<vmem>>) target_semaphore(%arg4 : memref<!tpu.dma_semaphore, #tpu.memory_space<semaphore_mem>>)
    %c5_i32 = arith.constant 5 : i32
    %26 = arith.addi %0, %c5_i32 : i32
    %27 = arith.index_cast %26 : i32 to index
    %28 = memref.load %arg1[%27] : memref<16xi32, #tpu.memory_space<smem>>
    %c0_i32_10 = arith.constant 0 : i32
    %29 = tpu.memref_slice %arg2[%28, %c0_i32_10] : memref<173x32xf32, #tpu.memory_space<any>> -> memref<1x32xf32, #tpu.memory_space<any>>
    %c0_i32_11 = arith.constant 0 : i32
    %30 = tpu.memref_slice %arg3[%c5_i32, %c0_i32_11] : memref<8x32xf32, #tpu.memory_space<vmem>> -> memref<1x32xf32, #tpu.memory_space<vmem>>
    tpu.enqueue_dma source(%29 : memref<1x32xf32, #tpu.memory_space<any>>) target(%30 : memref<1x32xf32, #tpu.memory_space<vmem>>) target_semaphore(%arg4 : memref<!tpu.dma_semaphore, #tpu.memory_space<semaphore_mem>>)
    %c6_i32 = arith.constant 6 : i32
    %31 = arith.addi %0, %c6_i32 : i32
    %32 = arith.index_cast %31 : i32 to index
    %33 = memref.load %arg1[%32] : memref<16xi32, #tpu.memory_space<smem>>
    %c0_i32_12 = arith.constant 0 : i32
    %34 = tpu.memref_slice %arg2[%33, %c0_i32_12] : memref<173x32xf32, #tpu.memory_space<any>> -> memref<1x32xf32, #tpu.memory_space<any>>
    %c0_i32_13 = arith.constant 0 : i32
    %35 = tpu.memref_slice %arg3[%c6_i32, %c0_i32_13] : memref<8x32xf32, #tpu.memory_space<vmem>> -> memref<1x32xf32, #tpu.memory_space<vmem>>
    tpu.enqueue_dma source(%34 : memref<1x32xf32, #tpu.memory_space<any>>) target(%35 : memref<1x32xf32, #tpu.memory_space<vmem>>) target_semaphore(%arg4 : memref<!tpu.dma_semaphore, #tpu.memory_space<semaphore_mem>>)
    %c7_i32 = arith.constant 7 : i32
    %36 = arith.addi %0, %c7_i32 : i32
    %37 = arith.index_cast %36 : i32 to index
    %38 = memref.load %arg1[%37] : memref<16xi32, #tpu.memory_space<smem>>
    %c0_i32_14 = arith.constant 0 : i32
    %39 = tpu.memref_slice %arg2[%38, %c0_i32_14] : memref<173x32xf32, #tpu.memory_space<any>> -> memref<1x32xf32, #tpu.memory_space<any>>
    %c0_i32_15 = arith.constant 0 : i32
    %40 = tpu.memref_slice %arg3[%c7_i32, %c0_i32_15] : memref<8x32xf32, #tpu.memory_space<vmem>> -> memref<1x32xf32, #tpu.memory_space<vmem>>
    tpu.enqueue_dma source(%39 : memref<1x32xf32, #tpu.memory_space<any>>) target(%40 : memref<1x32xf32, #tpu.memory_space<vmem>>) target_semaphore(%arg4 : memref<!tpu.dma_semaphore, #tpu.memory_space<semaphore_mem>>)
    %c8_i32_16 = arith.constant 8 : i32
    tpu.wait_dma2 semaphore(%arg4 : memref<!tpu.dma_semaphore, #tpu.memory_space<semaphore_mem>>) src(%arg3 : memref<8x32xf32, #tpu.memory_space<vmem>>) dst(%arg3 : memref<8x32xf32, #tpu.memory_space<vmem>>)
    return
  }
  func.func @transform_1(%arg0: i32, %arg1: memref<16xi32, #tpu.memory_space<smem>>) -> (i32, i32) {
    %c0_i32 = arith.constant 0 : i32
    %c0_i32_0 = arith.constant 0 : i32
    return %arg0, %c0_i32 : i32, i32
  }
}

</mosaic_0001>

<llo_original>
// kernel: tpu_custom_call.1
$region0: #{tpu_custom_call.1}
  #allocation0 [shape = 'u32[]', space=smem, size = 0x4, offset = 0x4, fixed_abs, tag = 'smem constant byte address 0x4 - core index']
  #allocation1 [shape = 'u32[144,128]{1,0:T(1,128)}', space=vmem, size = 0x12000, scoped, tag = 'internal scratch']
  #allocation2 [shape = 's32[1]{0}', space=sflag, size = 0x4, scoped, tag = 'scratch operand']
  #allocation3 [shape = 's32[1]{0}', space=sflag, size = 0x4, scoped, tag = 'scoped memory for tpu_custom_call.1']
  #allocation4 [shape = 'u8[512]{0}', space=smem, size = 0x200, scoped, tag = 'prefetched SMEM operand 0']
  #allocation7 [shape = 's32[]', space=sflag, size = 0x4, offset = 0, fixed_abs, tag = 'sflag constant byte address 0x0 - dummy sync flag']
  #allocation8 [shape = 's32[]', space=sflag, size = 0x4, offset = 0, fixed_abs, tag = 'sflag constant byte address 0x0 - dummy sync flag']
  #allocation9 [shape = 's32[]', space=sflag, size = 0x4, offset = 0, fixed_abs, tag = 'sflag constant byte address 0x0 - dummy sync flag']
  #allocation10 [shape = 's32[]', space=sflag, size = 0x4, offset = 0, fixed_abs, tag = 'sflag constant byte address 0x0 - dummy sync flag']
  #allocation11 [shape = 's32[]', space=sflag, size = 0x4, offset = 0, fixed_abs, tag = 'sflag constant byte address 0x0 - dummy sync flag']
  #allocation12 [shape = 's32[]', space=sflag, size = 0x4, offset = 0, fixed_abs, tag = 'sflag constant byte address 0x0 - dummy sync flag']
  #allocation13 [shape = 's32[]', space=sflag, size = 0x4, offset = 0, fixed_abs, tag = 'sflag constant byte address 0x0 - dummy sync flag']
  #allocation14 [shape = 's32[]', space=sflag, size = 0x4, offset = 0, fixed_abs, tag = 'sflag constant byte address 0x0 - dummy sync flag']
  %s0 = inlined_call_operand.vmem [shape: s32[16], index: 0, kind: input, shape index: {}]
  %s1 = inlined_call_operand.vmem [shape: f32[173,32], index: 1, kind: input, shape index: {}]
  %s2 = inlined_call_operand.hbm [shape: f32[16,32], index: 2, kind: output, shape index: {}]
  %s3 = sld [smem:[#allocation0]]
  $region265: #{tpu_custom_call.1} parent=0
    _
  %s5 = ssub.s32 1, %s3
  %s6 = scalar_select 0, %s5, %s3
  %s7 = sshll.u32 %s0, 4
  %s8 = int_to_ptr.vmem [resolvable:$true] %s7
  %10 = dma.vmem_to_smem %s8, 16, [#allocation4], [#allocation3]
  %11 = dma.done [#allocation3], 16
  %12 = sfence
  $region1: #{tpu_custom_call.1} parent=0
    #allocation5 [shape = 'u8[8192]{0}', space=vmem, size = 0x2000, scoped, tag = 'output window, operand 0']
    #allocation6 [shape = 's32[2]{0}', space=sflag, size = 0x8, scoped, tag = 'scoped memory for tpu_custom_call.1']
    %13 = vsyncpa [#allocation6], 0
    %s14 = scalar_lea.sflag [#allocation6], 1
    %15 = vsyncpa %s14, 0
    loop: start=0, step=1, limit=3
    $region2: #{tpu_custom_call.1} parent=1 // loop_pre_header
      _
    $region3: #{tpu_custom_call.1} parent=1 // loop_header
      %s17 = sphi 0, %s21
      %p18 = scmp.ge.s32.totalorder %s17, 3
      %s26 = sphi 0, %s28
      %s29 = sphi 0, %s26
      %s39 = sphi 0, %s29
    $region4: #{tpu_custom_call.1} parent=1 // loop_header_branch
      %20 = sbr.rel (%p18) target = $region8
    $region5: #{tpu_custom_call.1} parent=1 // loop_body
      %s22 = ssub.s32 %s17, 1
      %s23 = sadd.s32 %s17, 1
      %s24 = ssub.s32 %s17, %s23
      %p25 = scmp.eq.s32.totalorder %s24, 0
      %s27 = sadd.s32 %s26, 1
      %s28 = scalar_select %p25, %s26, %s27
      %p30 = pneg %p25
      %p31 = scmp.eq.s32.totalorder %s17, 1
      %p32 = por %p30, %p31
      %p33 = scmp.ne.s32.totalorder %s26, %s29
      %p34 = scmp.eq.s32.totalorder %s17, 0
      %p35 = por %p33, %p34
      %p36 = scmp.ne.s32.totalorder %s26, %s29
      %p37 = scmp.eq.s32.totalorder %s22, 1
      %p38 = por %p36, %p37
      %p40 = scmp.ne.s32.totalorder %s29, %s39
      %p41 = scmp.eq.s32.totalorder %s22, 0
      %p42 = por %p40, %p41
      %p43 = scmp.lt.s32.totalorder %s17, 2
      // Predicated region
      $region9: #{tpu_custom_call.1} parent=5 // pred_check
        %p44 = pneg %p43
      $region10: #{tpu_custom_call.1} parent=5 // pred_check_branch
        %46 = sbr.rel (%p44) target = $region12
      $region11: #{tpu_custom_call.1} parent=5 // pred_region
        %p47 = pneg %p35
        %p48 = pneg %p32
        %s49 = sand.u32 %s26, 1
        %s50 = scalar_lea.sflag [#allocation6], %s49
        %s51 = sand.u32 %s26, 1
        %s52 = smul.addr %s51, 8
        %s53 = scalar_lea.vmem [#allocation5], %s52
        %s54 = smul.u32 %s17, 8
        %s55 = sld [smem:[#allocation4 + %s54]]
        %s56 = scalar_lea.vmem %s1, %s55
        %p58 = scmp.lt.u32.totalorder 1, 8
        %p59 = pneg %p58
        // Predicated region
        $region13: #{tpu_custom_call.1} parent=11 // pred_check
          _
        $region14: #{tpu_custom_call.1} parent=11 // pred_check_branch
          %61 = sbr.rel (%p58) target = $region16
        $region15: #{tpu_custom_call.1} parent=11 // pred_region
          %s77 = sand.u32 1, 7
          %p78 = scmp.eq.s32.totalorder %s77, 0
          %p79 = pneg %p78
          // Predicated region
          $region28: #{tpu_custom_call.1} parent=15 // pred_check
            _
          $region29: #{tpu_custom_call.1} parent=15 // pred_check_branch
            %81 = sbr.rel (%p78) target = $region31
          $region30: #{tpu_custom_call.1} parent=15 // pred_region
            %s82 = sand.u32 1, 7
            %s83 = ssub.s32 1, %s82
            %s84 = scalar_lea.vmem %s56, %s83
            %s85 = ssub.s32 1, %s82
            %s86 = scalar_lea.vmem %s53, %s85 [#allocation5]
            %s87 = sshll.u32 1, %s82
            %s88 = ssub.s32 %s87, 1
            loop: start=0, step=1, limit=1
            $region32: #{tpu_custom_call.1} parent=30 // loop_pre_header
              _
            $region33: #{tpu_custom_call.1} parent=30 // loop_header
              %s90 = sphi 0, %s94
              %p91 = scmp.ge.s32.totalorder %s90, 1
              %s95 = sphi %s84, %s84
              %s96 = sphi %s86, %s86
            $region34: #{tpu_custom_call.1} parent=30 // loop_header_branch
              %93 = sbr.rel (%p91) target = $region38
            $region35: #{tpu_custom_call.1} parent=30 // loop_body
              %v97 = vld [vmem:[%s95] sm:%s88]
              %98 = vst [vmem:[%s96] sm:%s88] %v97
            $region36: #{tpu_custom_call.1} parent=30 // loop_footer
              %s94 = sadd.s32 1, %s90
            $region37: #{tpu_custom_call.1} parent=30 // loop_footer_branch
              %89 = sbr.rel target = $region33
            $region38: #{tpu_custom_call.1} parent=30 // loop_exit
              _
          $region31: #{tpu_custom_call.1} parent=15 // pred_fallthru
            _
        $region16: #{tpu_custom_call.1} parent=11 // pred_fallthru
          _
        // Predicated region
        $region17: #{tpu_custom_call.1} parent=11 // pred_check
          %p62 = pneg %p58
        $region18: #{tpu_custom_call.1} parent=11 // pred_check_branch
          %64 = sbr.rel (%p62) target = $region20
        $region19: #{tpu_custom_call.1} parent=11 // pred_region
          %s65 = sshll.u32 1, 1
          %s66 = ssub.s32 %s65, 1
          loop: start=0, step=1, limit=1
          $region21: #{tpu_custom_call.1} parent=19 // loop_pre_header
            _
          $region22: #{tpu_custom_call.1} parent=19 // loop_header
            %s68 = sphi 0, %s72
            %p69 = scmp.ge.s32.totalorder %s68, 1
            %s73 = sphi %s56, %s56
            %s74 = sphi %s53, %s53
          $region23: #{tpu_custom_call.1} parent=19 // loop_header_branch
            %71 = sbr.rel (%p69) target = $region27
          $region24: #{tpu_custom_call.1} parent=19 // loop_body
            %v75 = vld [vmem:[%s73] sm:%s66]
            %76 = vst [vmem:[%s74] sm:%s66] %v75
          $region25: #{tpu_custom_call.1} parent=19 // loop_footer
            %s72 = sadd.s32 1, %s68
          $region26: #{tpu_custom_call.1} parent=19 // loop_footer_branch
            %67 = sbr.rel target = $region22
          $region27: #{tpu_custom_call.1} parent=19 // loop_exit
            _
        $region20: #{tpu_custom_call.1} parent=11 // pred_fallthru
          _
        // Predicated region
        $region39: #{tpu_custom_call.1} parent=11 // pred_check
          _
        $region40: #{tpu_custom_call.1} parent=11 // pred_check_branch
          %101 = sbr.rel (0) target = $region42
        $region41: #{tpu_custom_call.1} parent=11 // pred_region
          %102 = vsyncadd [#allocation2], 16
        $region42: #{tpu_custom_call.1} parent=11 // pred_fallthru
          _
        %s103 = sadd.s32 %s54, 1
        %s104 = sld [smem:[#allocation4 + %s103]]
        %s105 = scalar_lea.vmem %s1, %s104
        %s106 = scalar_lea.vmem %s53, 1 [#allocation5]
        %p108 = scmp.lt.u32.totalorder 1, 8
        %p109 = pneg %p108
        // Predicated region
        $region43: #{tpu_custom_call.1} parent=11 // pred_check
          _
        $region44: #{tpu_custom_call.1} parent=11 // pred_check_branch
          %111 = sbr.rel (%p108) target = $region46
        $region45: #{tpu_custom_call.1} parent=11 // pred_region
          %s127 = sand.u32 1, 7
          %p128 = scmp.eq.s32.totalorder %s127, 0
          %p129 = pneg %p128
          // Predicated region
          $region58: #{tpu_custom_call.1} parent=45 // pred_check
            _
          $region59: #{tpu_custom_call.1} parent=45 // pred_check_branch
            %131 = sbr.rel (%p128) target = $region61
          $region60: #{tpu_custom_call.1} parent=45 // pred_region
            %s132 = sand.u32 1, 7
            %s133 = ssub.s32 1, %s132
            %s134 = scalar_lea.vmem %s105, %s133
            %s135 = ssub.s32 1, %s132
            %s136 = scalar_lea.vmem %s106, %s135 [#allocation5]
            %s137 = sshll.u32 1, %s132
            %s138 = ssub.s32 %s137, 1
            loop: start=0, step=1, limit=1
            $region62: #{tpu_custom_call.1} parent=60 // loop_pre_header
              _
            $region63: #{tpu_custom_call.1} parent=60 // loop_header
              %s140 = sphi 0, %s144
              %p141 = scmp.ge.s32.totalorder %s140, 1
              %s145 = sphi %s134, %s134
              %s146 = sphi %s136, %s136
            $region64: #{tpu_custom_call.1} parent=60 // loop_header_branch
              %143 = sbr.rel (%p141) target = $region68
            $region65: #{tpu_custom_call.1} parent=60 // loop_body
              %v147 = vld [vmem:[%s145] sm:%s138]
              %148 = vst [vmem:[%s146] sm:%s138] %v147
            $region66: #{tpu_custom_call.1} parent=60 // loop_footer
              %s144 = sadd.s32 1, %s140
            $region67: #{tpu_custom_call.1} parent=60 // loop_footer_branch
              %139 = sbr.rel target = $region63
            $region68: #{tpu_custom_call.1} parent=60 // loop_exit
              _
          $region61: #{tpu_custom_call.1} parent=45 // pred_fallthru
            _
        $region46: #{tpu_custom_call.1} parent=11 // pred_fallthru
          _
        // Predicated region
        $region47: #{tpu_custom_call.1} parent=11 // pred_check
          %p112 = pneg %p108
        $region48: #{tpu_custom_call.1} parent=11 // pred_check_branch
          %114 = sbr.rel (%p112) target = $region50
        $region49: #{tpu_custom_call.1} parent=11 // pred_region
          %s115 = sshll.u32 1, 1
          %s116 = ssub.s32 %s115, 1
          loop: start=0, step=1, limit=1
          $region51: #{tpu_custom_call.1} parent=49 // loop_pre_header
            _
          $region52: #{tpu_custom_call.1} parent=49 // loop_header
            %s118 = sphi 0, %s122
            %p119 = scmp.ge.s32.totalorder %s118, 1
            %s123 = sphi %s105, %s105
            %s124 = sphi %s106, %s106
          $region53: #{tpu_custom_call.1} parent=49 // loop_header_branch
            %121 = sbr.rel (%p119) target = $region57
          $region54: #{tpu_custom_call.1} parent=49 // loop_body
            %v125 = vld [vmem:[%s123] sm:%s116]
            %126 = vst [vmem:[%s124] sm:%s116] %v125
          $region55: #{tpu_custom_call.1} parent=49 // loop_footer
            %s122 = sadd.s32 1, %s118
          $region56: #{tpu_custom_call.1} parent=49 // loop_footer_branch
            %117 = sbr.rel target = $region52
          $region57: #{tpu_custom_call.1} parent=49 // loop_exit
            _
        $region50: #{tpu_custom_call.1} parent=11 // pred_fallthru
          _
        // Predicated region
        $region69: #{tpu_custom_call.1} parent=11 // pred_check
          _
        $region70: #{tpu_custom_call.1} parent=11 // pred_check_branch
          %151 = sbr.rel (0) target = $region72
        $region71: #{tpu_custom_call.1} parent=11 // pred_region
          %152 = vsyncadd [#allocation2], 16
        $region72: #{tpu_custom_call.1} parent=11 // pred_fallthru
          _
        %s153 = sadd.s32 %s54, 2
        %s154 = sld [smem:[#allocation4 + %s153]]
        %s155 = scalar_lea.vmem %s1, %s154
        %s156 = scalar_lea.vmem %s53, 2 [#allocation5]
        %p158 = scmp.lt.u32.totalorder 1, 8
        %p159 = pneg %p158
        // Predicated region
        $region73: #{tpu_custom_call.1} parent=11 // pred_check
          _
        $region74: #{tpu_custom_call.1} parent=11 // pred_check_branch
          %161 = sbr.rel (%p158) target = $region76
        $region75: #{tpu_custom_call.1} parent=11 // pred_region
          %s177 = sand.u32 1, 7
          %p178 = scmp.eq.s32.totalorder %s177, 0
          %p179 = pneg %p178
          // Predicated region
          $region88: #{tpu_custom_call.1} parent=75 // pred_check
            _
          $region89: #{tpu_custom_call.1} parent=75 // pred_check_branch
            %181 = sbr.rel (%p178) target = $region91
          $region90: #{tpu_custom_call.1} parent=75 // pred_region
            %s182 = sand.u32 1, 7
            %s183 = ssub.s32 1, %s182
            %s184 = scalar_lea.vmem %s155, %s183
            %s185 = ssub.s32 1, %s182
            %s186 = scalar_lea.vmem %s156, %s185 [#allocation5]
            %s187 = sshll.u32 1, %s182
            %s188 = ssub.s32 %s187, 1
            loop: start=0, step=1, limit=1
            $region92: #{tpu_custom_call.1} parent=90 // loop_pre_header
              _
            $region93: #{tpu_custom_call.1} parent=90 // loop_header
              %s190 = sphi 0, %s194
              %p191 = scmp.ge.s32.totalorder %s190, 1
              %s195 = sphi %s184, %s184
              %s196 = sphi %s186, %s186
            $region94: #{tpu_custom_call.1} parent=90 // loop_header_branch
              %193 = sbr.rel (%p191) target = $region98
            $region95: #{tpu_custom_call.1} parent=90 // loop_body
              %v197 = vld [vmem:[%s195] sm:%s188]
              %198 = vst [vmem:[%s196] sm:%s188] %v197
            $region96: #{tpu_custom_call.1} parent=90 // loop_footer
              %s194 = sadd.s32 1, %s190
            $region97: #{tpu_custom_call.1} parent=90 // loop_footer_branch
              %189 = sbr.rel target = $region93
            $region98: #{tpu_custom_call.1} parent=90 // loop_exit
              _
          $region91: #{tpu_custom_call.1} parent=75 // pred_fallthru
            _
        $region76: #{tpu_custom_call.1} parent=11 // pred_fallthru
          _
        // Predicated region
        $region77: #{tpu_custom_call.1} parent=11 // pred_check
          %p162 = pneg %p158
        $region78: #{tpu_custom_call.1} parent=11 // pred_check_branch
          %164 = sbr.rel (%p162) target = $region80
        $region79: #{tpu_custom_call.1} parent=11 // pred_region
          %s165 = sshll.u32 1, 1
          %s166 = ssub.s32 %s165, 1
          loop: start=0, step=1, limit=1
          $region81: #{tpu_custom_call.1} parent=79 // loop_pre_header
            _
          $region82: #{tpu_custom_call.1} parent=79 // loop_header
            %s168 = sphi 0, %s172
            %p169 = scmp.ge.s32.totalorder %s168, 1
            %s173 = sphi %s155, %s155
            %s174 = sphi %s156, %s156
          $region83: #{tpu_custom_call.1} parent=79 // loop_header_branch
            %171 = sbr.rel (%p169) target = $region87
          $region84: #{tpu_custom_call.1} parent=79 // loop_body
            %v175 = vld [vmem:[%s173] sm:%s166]
            %176 = vst [vmem:[%s174] sm:%s166] %v175
          $region85: #{tpu_custom_call.1} parent=79 // loop_footer
            %s172 = sadd.s32 1, %s168
          $region86: #{tpu_custom_call.1} parent=79 // loop_footer_branch
            %167 = sbr.rel target = $region82
          $region87: #{tpu_custom_call.1} parent=79 // loop_exit
            _
        $region80: #{tpu_custom_call.1} parent=11 // pred_fallthru
          _
        // Predicated region
        $region99: #{tpu_custom_call.1} parent=11 // pred_check
          _
        $region100: #{tpu_custom_call.1} parent=11 // pred_check_branch
          %201 = sbr.rel (0) target = $region102
        $region101: #{tpu_custom_call.1} parent=11 // pred_region
          %202 = vsyncadd [#allocation2], 16
        $region102: #{tpu_custom_call.1} parent=11 // pred_fallthru
          _
        %s203 = sadd.s32 %s54, 3
        %s204 = sld [smem:[#allocation4 + %s203]]
        %s205 = scalar_lea.vmem %s1, %s204
        %s206 = scalar_lea.vmem %s53, 3 [#allocation5]
        %p208 = scmp.lt.u32.totalorder 1, 8
        %p209 = pneg %p208
        // Predicated region
        $region103: #{tpu_custom_call.1} parent=11 // pred_check
          _
        $region104: #{tpu_custom_call.1} parent=11 // pred_check_branch
          %211 = sbr.rel (%p208) target = $region106
        $region105: #{tpu_custom_call.1} parent=11 // pred_region
          %s227 = sand.u32 1, 7
          %p228 = scmp.eq.s32.totalorder %s227, 0
          %p229 = pneg %p228
          // Predicated region
          $region118: #{tpu_custom_call.1} parent=105 // pred_check
            _
          $region119: #{tpu_custom_call.1} parent=105 // pred_check_branch
            %231 = sbr.rel (%p228) target = $region121
          $region120: #{tpu_custom_call.1} parent=105 // pred_region
            %s232 = sand.u32 1, 7
            %s233 = ssub.s32 1, %s232
            %s234 = scalar_lea.vmem %s205, %s233
            %s235 = ssub.s32 1, %s232
            %s236 = scalar_lea.vmem %s206, %s235 [#allocation5]
            %s237 = sshll.u32 1, %s232
            %s238 = ssub.s32 %s237, 1
            loop: start=0, step=1, limit=1
            $region122: #{tpu_custom_call.1} parent=120 // loop_pre_header
              _
            $region123: #{tpu_custom_call.1} parent=120 // loop_header
              %s240 = sphi 0, %s244
              %p241 = scmp.ge.s32.totalorder %s240, 1
              %s245 = sphi %s234, %s234
              %s246 = sphi %s236, %s236
            $region124: #{tpu_custom_call.1} parent=120 // loop_header_branch
              %243 = sbr.rel (%p241) target = $region128
            $region125: #{tpu_custom_call.1} parent=120 // loop_body
              %v247 = vld [vmem:[%s245] sm:%s238]
              %248 = vst [vmem:[%s246] sm:%s238] %v247
            $region126: #{tpu_custom_call.1} parent=120 // loop_footer
              %s244 = sadd.s32 1, %s240
            $region127: #{tpu_custom_call.1} parent=120 // loop_footer_branch
              %239 = sbr.rel target = $region123
            $region128: #{tpu_custom_call.1} parent=120 // loop_exit
              _
          $region121: #{tpu_custom_call.1} parent=105 // pred_fallthru
            _
        $region106: #{tpu_custom_call.1} parent=11 // pred_fallthru
          _
        // Predicated region
        $region107: #{tpu_custom_call.1} parent=11 // pred_check
          %p212 = pneg %p208
        $region108: #{tpu_custom_call.1} parent=11 // pred_check_branch
          %214 = sbr.rel (%p212) target = $region110
        $region109: #{tpu_custom_call.1} parent=11 // pred_region
          %s215 = sshll.u32 1, 1
          %s216 = ssub.s32 %s215, 1
          loop: start=0, step=1, limit=1
          $region111: #{tpu_custom_call.1} parent=109 // loop_pre_header
            _
          $region112: #{tpu_custom_call.1} parent=109 // loop_header
            %s218 = sphi 0, %s222
            %p219 = scmp.ge.s32.totalorder %s218, 1
            %s223 = sphi %s205, %s205
            %s224 = sphi %s206, %s206
          $region113: #{tpu_custom_call.1} parent=109 // loop_header_branch
            %221 = sbr.rel (%p219) target = $region117
          $region114: #{tpu_custom_call.1} parent=109 // loop_body
            %v225 = vld [vmem:[%s223] sm:%s216]
            %226 = vst [vmem:[%s224] sm:%s216] %v225
          $region115: #{tpu_custom_call.1} parent=109 // loop_footer
            %s222 = sadd.s32 1, %s218
          $region116: #{tpu_custom_call.1} parent=109 // loop_footer_branch
            %217 = sbr.rel target = $region112
          $region117: #{tpu_custom_call.1} parent=109 // loop_exit
            _
        $region110: #{tpu_custom_call.1} parent=11 // pred_fallthru
          _
        // Predicated region
        $region129: #{tpu_custom_call.1} parent=11 // pred_check
          _
        $region130: #{tpu_custom_call.1} parent=11 // pred_check_branch
          %251 = sbr.rel (0) target = $region132
        $region131: #{tpu_custom_call.1} parent=11 // pred_region
          %252 = vsyncadd [#allocation2], 16
        $region132: #{tpu_custom_call.1} parent=11 // pred_fallthru
          _
        %s253 = sadd.s32 %s54, 4
        %s254 = sld [smem:[#allocation4 + %s253]]
        %s255 = scalar_lea.vmem %s1, %s254
        %s256 = scalar_lea.vmem %s53, 4 [#allocation5]
        %p258 = scmp.lt.u32.totalorder 1, 8
        %p259 = pneg %p258
        // Predicated region
        $region133: #{tpu_custom_call.1} parent=11 // pred_check
          _
        $region134: #{tpu_custom_call.1} parent=11 // pred_check_branch
          %261 = sbr.rel (%p258) target = $region136
        $region135: #{tpu_custom_call.1} parent=11 // pred_region
          %s277 = sand.u32 1, 7
          %p278 = scmp.eq.s32.totalorder %s277, 0
          %p279 = pneg %p278
          // Predicated region
          $region148: #{tpu_custom_call.1} parent=135 // pred_check
            _
          $region149: #{tpu_custom_call.1} parent=135 // pred_check_branch
            %281 = sbr.rel (%p278) target = $region151
          $region150: #{tpu_custom_call.1} parent=135 // pred_region
            %s282 = sand.u32 1, 7
            %s283 = ssub.s32 1, %s282
            %s284 = scalar_lea.vmem %s255, %s283
            %s285 = ssub.s32 1, %s282
            %s286 = scalar_lea.vmem %s256, %s285 [#allocation5]
            %s287 = sshll.u32 1, %s282
            %s288 = ssub.s32 %s287, 1
            loop: start=0, step=1, limit=1
            $region152: #{tpu_custom_call.1} parent=150 // loop_pre_header
              _
            $region153: #{tpu_custom_call.1} parent=150 // loop_header
              %s290 = sphi 0, %s294
              %p291 = scmp.ge.s32.totalorder %s290, 1
              %s295 = sphi %s284, %s284
              %s296 = sphi %s286, %s286
            $region154: #{tpu_custom_call.1} parent=150 // loop_header_branch
              %293 = sbr.rel (%p291) target = $region158
            $region155: #{tpu_custom_call.1} parent=150 // loop_body
              %v297 = vld [vmem:[%s295] sm:%s288]
              %298 = vst [vmem:[%s296] sm:%s288] %v297
            $region156: #{tpu_custom_call.1} parent=150 // loop_footer
              %s294 = sadd.s32 1, %s290
            $region157: #{tpu_custom_call.1} parent=150 // loop_footer_branch
              %289 = sbr.rel target = $region153
            $region158: #{tpu_custom_call.1} parent=150 // loop_exit
              _
          $region151: #{tpu_custom_call.1} parent=135 // pred_fallthru
            _
        $region136: #{tpu_custom_call.1} parent=11 // pred_fallthru
          _
        // Predicated region
        $region137: #{tpu_custom_call.1} parent=11 // pred_check
          %p262 = pneg %p258
        $region138: #{tpu_custom_call.1} parent=11 // pred_check_branch
          %264 = sbr.rel (%p262) target = $region140
        $region139: #{tpu_custom_call.1} parent=11 // pred_region
          %s265 = sshll.u32 1, 1
          %s266 = ssub.s32 %s265, 1
          loop: start=0, step=1, limit=1
          $region141: #{tpu_custom_call.1} parent=139 // loop_pre_header
            _
          $region142: #{tpu_custom_call.1} parent=139 // loop_header
            %s268 = sphi 0, %s272
            %p269 = scmp.ge.s32.totalorder %s268, 1
            %s273 = sphi %s255, %s255
            %s274 = sphi %s256, %s256
          $region143: #{tpu_custom_call.1} parent=139 // loop_header_branch
            %271 = sbr.rel (%p269) target = $region147
          $region144: #{tpu_custom_call.1} parent=139 // loop_body
            %v275 = vld [vmem:[%s273] sm:%s266]
            %276 = vst [vmem:[%s274] sm:%s266] %v275
          $region145: #{tpu_custom_call.1} parent=139 // loop_footer
            %s272 = sadd.s32 1, %s268
          $region146: #{tpu_custom_call.1} parent=139 // loop_footer_branch
            %267 = sbr.rel target = $region142
          $region147: #{tpu_custom_call.1} parent=139 // loop_exit
            _
        $region140: #{tpu_custom_call.1} parent=11 // pred_fallthru
          _
        // Predicated region
        $region159: #{tpu_custom_call.1} parent=11 // pred_check
          _
        $region160: #{tpu_custom_call.1} parent=11 // pred_check_branch
          %301 = sbr.rel (0) target = $region162
        $region161: #{tpu_custom_call.1} parent=11 // pred_region
          %302 = vsyncadd [#allocation2], 16
        $region162: #{tpu_custom_call.1} parent=11 // pred_fallthru
          _
        %s303 = sadd.s32 %s54, 5
        %s304 = sld [smem:[#allocation4 + %s303]]
        %s305 = scalar_lea.vmem %s1, %s304
        %s306 = scalar_lea.vmem %s53, 5 [#allocation5]
        %p308 = scmp.lt.u32.totalorder 1, 8
        %p309 = pneg %p308
        // Predicated region
        $region163: #{tpu_custom_call.1} parent=11 // pred_check
          _
        $region164: #{tpu_custom_call.1} parent=11 // pred_check_branch
          %311 = sbr.rel (%p308) target = $region166
        $region165: #{tpu_custom_call.1} parent=11 // pred_region
          %s327 = sand.u32 1, 7
          %p328 = scmp.eq.s32.totalorder %s327, 0
          %p329 = pneg %p328
          // Predicated region
          $region178: #{tpu_custom_call.1} parent=165 // pred_check
            _
          $region179: #{tpu_custom_call.1} parent=165 // pred_check_branch
            %331 = sbr.rel (%p328) target = $region181
          $region180: #{tpu_custom_call.1} parent=165 // pred_region
            %s332 = sand.u32 1, 7
            %s333 = ssub.s32 1, %s332
            %s334 = scalar_lea.vmem %s305, %s333
            %s335 = ssub.s32 1, %s332
            %s336 = scalar_lea.vmem %s306, %s335 [#allocation5]
            %s337 = sshll.u32 1, %s332
            %s338 = ssub.s32 %s337, 1
            loop: start=0, step=1, limit=1
            $region182: #{tpu_custom_call.1} parent=180 // loop_pre_header
              _
            $region183: #{tpu_custom_call.1} parent=180 // loop_header
              %s340 = sphi 0, %s344
              %p341 = scmp.ge.s32.totalorder %s340, 1
              %s345 = sphi %s334, %s334
              %s346 = sphi %s336, %s336
            $region184: #{tpu_custom_call.1} parent=180 // loop_header_branch
              %343 = sbr.rel (%p341) target = $region188
            $region185: #{tpu_custom_call.1} parent=180 // loop_body
              %v347 = vld [vmem:[%s345] sm:%s338]
              %348 = vst [vmem:[%s346] sm:%s338] %v347
            $region186: #{tpu_custom_call.1} parent=180 // loop_footer
              %s344 = sadd.s32 1, %s340
            $region187: #{tpu_custom_call.1} parent=180 // loop_footer_branch
              %339 = sbr.rel target = $region183
            $region188: #{tpu_custom_call.1} parent=180 // loop_exit
              _
          $region181: #{tpu_custom_call.1} parent=165 // pred_fallthru
            _
        $region166: #{tpu_custom_call.1} parent=11 // pred_fallthru
          _
        // Predicated region
        $region167: #{tpu_custom_call.1} parent=11 // pred_check
          %p312 = pneg %p308
        $region168: #{tpu_custom_call.1} parent=11 // pred_check_branch
          %314 = sbr.rel (%p312) target = $region170
        $region169: #{tpu_custom_call.1} parent=11 // pred_region
          %s315 = sshll.u32 1, 1
          %s316 = ssub.s32 %s315, 1
          loop: start=0, step=1, limit=1
          $region171: #{tpu_custom_call.1} parent=169 // loop_pre_header
            _
          $region172: #{tpu_custom_call.1} parent=169 // loop_header
            %s318 = sphi 0, %s322
            %p319 = scmp.ge.s32.totalorder %s318, 1
            %s323 = sphi %s305, %s305
            %s324 = sphi %s306, %s306
          $region173: #{tpu_custom_call.1} parent=169 // loop_header_branch
            %321 = sbr.rel (%p319) target = $region177
          $region174: #{tpu_custom_call.1} parent=169 // loop_body
            %v325 = vld [vmem:[%s323] sm:%s316]
            %326 = vst [vmem:[%s324] sm:%s316] %v325
          $region175: #{tpu_custom_call.1} parent=169 // loop_footer
            %s322 = sadd.s32 1, %s318
          $region176: #{tpu_custom_call.1} parent=169 // loop_footer_branch
            %317 = sbr.rel target = $region172
          $region177: #{tpu_custom_call.1} parent=169 // loop_exit
            _
        $region170: #{tpu_custom_call.1} parent=11 // pred_fallthru
          _
        // Predicated region
        $region189: #{tpu_custom_call.1} parent=11 // pred_check
          _
        $region190: #{tpu_custom_call.1} parent=11 // pred_check_branch
          %351 = sbr.rel (0) target = $region192
        $region191: #{tpu_custom_call.1} parent=11 // pred_region
          %352 = vsyncadd [#allocation2], 16
        $region192: #{tpu_custom_call.1} parent=11 // pred_fallthru
          _
        %s353 = sadd.s32 %s54, 6
        %s354 = sld [smem:[#allocation4 + %s353]]
        %s355 = scalar_lea.vmem %s1, %s354
        %s356 = scalar_lea.vmem %s53, 6 [#allocation5]
        %p358 = scmp.lt.u32.totalorder 1, 8
        %p359 = pneg %p358
        // Predicated region
        $region193: #{tpu_custom_call.1} parent=11 // pred_check
          _
        $region194: #{tpu_custom_call.1} parent=11 // pred_check_branch
          %361 = sbr.rel (%p358) target = $region196
        $region195: #{tpu_custom_call.1} parent=11 // pred_region
          %s377 = sand.u32 1, 7
          %p378 = scmp.eq.s32.totalorder %s377, 0
          %p379 = pneg %p378
          // Predicated region
          $region208: #{tpu_custom_call.1} parent=195 // pred_check
            _
          $region209: #{tpu_custom_call.1} parent=195 // pred_check_branch
            %381 = sbr.rel (%p378) target = $region211
          $region210: #{tpu_custom_call.1} parent=195 // pred_region
            %s382 = sand.u32 1, 7
            %s383 = ssub.s32 1, %s382
            %s384 = scalar_lea.vmem %s355, %s383
            %s385 = ssub.s32 1, %s382
            %s386 = scalar_lea.vmem %s356, %s385 [#allocation5]
            %s387 = sshll.u32 1, %s382
            %s388 = ssub.s32 %s387, 1
            loop: start=0, step=1, limit=1
            $region212: #{tpu_custom_call.1} parent=210 // loop_pre_header
              _
            $region213: #{tpu_custom_call.1} parent=210 // loop_header
              %s390 = sphi 0, %s394
              %p391 = scmp.ge.s32.totalorder %s390, 1
              %s395 = sphi %s384, %s384
              %s396 = sphi %s386, %s386
            $region214: #{tpu_custom_call.1} parent=210 // loop_header_branch
              %393 = sbr.rel (%p391) target = $region218
            $region215: #{tpu_custom_call.1} parent=210 // loop_body
              %v397 = vld [vmem:[%s395] sm:%s388]
              %398 = vst [vmem:[%s396] sm:%s388] %v397
            $region216: #{tpu_custom_call.1} parent=210 // loop_footer
              %s394 = sadd.s32 1, %s390
            $region217: #{tpu_custom_call.1} parent=210 // loop_footer_branch
              %389 = sbr.rel target = $region213
            $region218: #{tpu_custom_call.1} parent=210 // loop_exit
              _
          $region211: #{tpu_custom_call.1} parent=195 // pred_fallthru
            _
        $region196: #{tpu_custom_call.1} parent=11 // pred_fallthru
          _
        // Predicated region
        $region197: #{tpu_custom_call.1} parent=11 // pred_check
          %p362 = pneg %p358
        $region198: #{tpu_custom_call.1} parent=11 // pred_check_branch
          %364 = sbr.rel (%p362) target = $region200
        $region199: #{tpu_custom_call.1} parent=11 // pred_region
          %s365 = sshll.u32 1, 1
          %s366 = ssub.s32 %s365, 1
          loop: start=0, step=1, limit=1
          $region201: #{tpu_custom_call.1} parent=199 // loop_pre_header
            _
          $region202: #{tpu_custom_call.1} parent=199 // loop_header
            %s368 = sphi 0, %s372
            %p369 = scmp.ge.s32.totalorder %s368, 1
            %s373 = sphi %s355, %s355
            %s374 = sphi %s356, %s356
          $region203: #{tpu_custom_call.1} parent=199 // loop_header_branch
            %371 = sbr.rel (%p369) target = $region207
          $region204: #{tpu_custom_call.1} parent=199 // loop_body
            %v375 = vld [vmem:[%s373] sm:%s366]
            %376 = vst [vmem:[%s374] sm:%s366] %v375
          $region205: #{tpu_custom_call.1} parent=199 // loop_footer
            %s372 = sadd.s32 1, %s368
          $region206: #{tpu_custom_call.1} parent=199 // loop_footer_branch
            %367 = sbr.rel target = $region202
          $region207: #{tpu_custom_call.1} parent=199 // loop_exit
            _
        $region200: #{tpu_custom_call.1} parent=11 // pred_fallthru
          _
        // Predicated region
        $region219: #{tpu_custom_call.1} parent=11 // pred_check
          _
        $region220: #{tpu_custom_call.1} parent=11 // pred_check_branch
          %401 = sbr.rel (0) target = $region222
        $region221: #{tpu_custom_call.1} parent=11 // pred_region
          %402 = vsyncadd [#allocation2], 16
        $region222: #{tpu_custom_call.1} parent=11 // pred_fallthru
          _
        %s403 = sadd.s32 %s54, 7
        %s404 = sld [smem:[#allocation4 + %s403]]
        %s405 = scalar_lea.vmem %s1, %s404
        %s406 = scalar_lea.vmem %s53, 7 [#allocation5]
        %p408 = scmp.lt.u32.totalorder 1, 8
        %p409 = pneg %p408
        // Predicated region
        $region223: #{tpu_custom_call.1} parent=11 // pred_check
          _
        $region224: #{tpu_custom_call.1} parent=11 // pred_check_branch
          %411 = sbr.rel (%p408) target = $region226
        $region225: #{tpu_custom_call.1} parent=11 // pred_region
          %s427 = sand.u32 1, 7
          %p428 = scmp.eq.s32.totalorder %s427, 0
          %p429 = pneg %p428
          // Predicated region
          $region238: #{tpu_custom_call.1} parent=225 // pred_check
            _
          $region239: #{tpu_custom_call.1} parent=225 // pred_check_branch
            %431 = sbr.rel (%p428) target = $region241
          $region240: #{tpu_custom_call.1} parent=225 // pred_region
            %s432 = sand.u32 1, 7
            %s433 = ssub.s32 1, %s432
            %s434 = scalar_lea.vmem %s405, %s433
            %s435 = ssub.s32 1, %s432
            %s436 = scalar_lea.vmem %s406, %s435 [#allocation5]
            %s437 = sshll.u32 1, %s432
            %s438 = ssub.s32 %s437, 1
            loop: start=0, step=1, limit=1
            $region242: #{tpu_custom_call.1} parent=240 // loop_pre_header
              _
            $region243: #{tpu_custom_call.1} parent=240 // loop_header
              %s440 = sphi 0, %s444
              %p441 = scmp.ge.s32.totalorder %s440, 1
              %s445 = sphi %s434, %s434
              %s446 = sphi %s436, %s436
            $region244: #{tpu_custom_call.1} parent=240 // loop_header_branch
              %443 = sbr.rel (%p441) target = $region248
            $region245: #{tpu_custom_call.1} parent=240 // loop_body
              %v447 = vld [vmem:[%s445] sm:%s438]
              %448 = vst [vmem:[%s446] sm:%s438] %v447
            $region246: #{tpu_custom_call.1} parent=240 // loop_footer
              %s444 = sadd.s32 1, %s440
            $region247: #{tpu_custom_call.1} parent=240 // loop_footer_branch
              %439 = sbr.rel target = $region243
            $region248: #{tpu_custom_call.1} parent=240 // loop_exit
              _
          $region241: #{tpu_custom_call.1} parent=225 // pred_fallthru
            _
        $region226: #{tpu_custom_call.1} parent=11 // pred_fallthru
          _
        // Predicated region
        $region227: #{tpu_custom_call.1} parent=11 // pred_check
          %p412 = pneg %p408
        $region228: #{tpu_custom_call.1} parent=11 // pred_check_branch
          %414 = sbr.rel (%p412) target = $region230
        $region229: #{tpu_custom_call.1} parent=11 // pred_region
          %s415 = sshll.u32 1, 1
          %s416 = ssub.s32 %s415, 1
          loop: start=0, step=1, limit=1
          $region231: #{tpu_custom_call.1} parent=229 // loop_pre_header
            _
          $region232: #{tpu_custom_call.1} parent=229 // loop_header
            %s418 = sphi 0, %s422
            %p419 = scmp.ge.s32.totalorder %s418, 1
            %s423 = sphi %s405, %s405
            %s424 = sphi %s406, %s406
          $region233: #{tpu_custom_call.1} parent=229 // loop_header_branch
            %421 = sbr.rel (%p419) target = $region237
          $region234: #{tpu_custom_call.1} parent=229 // loop_body
            %v425 = vld [vmem:[%s423] sm:%s416]
            %426 = vst [vmem:[%s424] sm:%s416] %v425
          $region235: #{tpu_custom_call.1} parent=229 // loop_footer
            %s422 = sadd.s32 1, %s418
          $region236: #{tpu_custom_call.1} parent=229 // loop_footer_branch
            %417 = sbr.rel target = $region232
          $region237: #{tpu_custom_call.1} parent=229 // loop_exit
            _
        $region230: #{tpu_custom_call.1} parent=11 // pred_fallthru
          _
        // Predicated region
        $region249: #{tpu_custom_call.1} parent=11 // pred_check
          _
        $region250: #{tpu_custom_call.1} parent=11 // pred_check_branch
          %451 = sbr.rel (0) target = $region252
        $region251: #{tpu_custom_call.1} parent=11 // pred_region
          %452 = vsyncadd [#allocation2], 16
        $region252: #{tpu_custom_call.1} parent=11 // pred_fallthru
          _
        %s453 = smul.u32 8, 1
        %s454 = sshll.u32 %s453, 4
        %455 = dma.done [#allocation2], %s454
        %s456 = sand.u32 %s26, 1
        %s457 = scalar_lea.sflag [#allocation6], %s456
        %s458 = sand.u32 %s26, 1
        %s459 = smul.addr %s458, 8
        %s460 = scalar_lea.vmem [#allocation5], %s459
        // Predicated region
        $region253: #{tpu_custom_call.1} parent=11 // pred_check
          %p461 = pneg %p32
        $region254: #{tpu_custom_call.1} parent=11 // pred_check_branch
          %463 = sbr.rel (%p461) target = $region256
        $region255: #{tpu_custom_call.1} parent=11 // pred_region
          %s465 = ssub.s32 128, 128
          %466 = vsyncadd %s457, %s465
          %s467 = smul.addr %s17, 128
          %s468 = scalar_lea.hbm %s2, %s467
          %s470 = sshll.u32 %s460, 4
          %s471 = int_to_ptr.vmem [resolvable:$true] %s470
          %473 = dma.vmem_to_hbm [thread:$0]  %s471, 128, %s468, %s457
        $region256: #{tpu_custom_call.1} parent=11 // pred_fallthru
          _
      $region12: #{tpu_custom_call.1} parent=5 // pred_fallthru
        _
      %p474 = scmp.le.s32.totalorder 1, %s17
      // Predicated region
      $region257: #{tpu_custom_call.1} parent=5 // pred_check
        %p475 = pneg %p474
      $region258: #{tpu_custom_call.1} parent=5 // pred_check_branch
        %477 = sbr.rel (%p475) target = $region260
      $region259: #{tpu_custom_call.1} parent=5 // pred_region
        %s478 = ssub.s32 %s17, 1
        // Predicated region
        $region261: #{tpu_custom_call.1} parent=259 // pred_check
          %p479 = pneg %p38
        $region262: #{tpu_custom_call.1} parent=259 // pred_check_branch
          %481 = sbr.rel (%p479) target = $region264
        $region263: #{tpu_custom_call.1} parent=259 // pred_region
          %s482 = sand.u32 %s29, 1
          %s483 = scalar_lea.sflag [#allocation6], %s482
          %s484 = sand.u32 %s29, 1
          %s485 = smul.addr %s484, 8
          %s486 = scalar_lea.vmem [#allocation5], %s485
          %487 = dma.done %s483, 128
        $region264: #{tpu_custom_call.1} parent=259 // pred_fallthru
          _
      $region260: #{tpu_custom_call.1} parent=5 // pred_fallthru
        _
    $region6: #{tpu_custom_call.1} parent=1 // loop_footer
      %s21 = sadd.s32 1, %s17
    $region7: #{tpu_custom_call.1} parent=1 // loop_footer_branch
      %16 = sbr.rel target = $region3
    $region8: #{tpu_custom_call.1} parent=1 // loop_exit
      _
    %488 = vsyncpa [#allocation6], 1
    %s489 = scalar_lea.sflag [#allocation6], 1
    %490 = vsyncpa %s489, 1
  %491 = vsyncmov [#allocation2]
  %s492 = vpop.sfrf %491
  %p493 = scmp.eq.s32.totalorder %s492, 0
  %p494 = pneg %p493
  %496 = shalt.err (%p494)

</llo_original>
